<compile_context>
chip_gen: v7x
topology: tpu7x:2x2x1
jax: 0.10.0
libtpu: 0.0.40
codegen_flags: <defaults>
</compile_context>

<pallas_src>
import jax
import jax.numpy as jnp
from jax.experimental import pallas as pl
from jax.experimental.pallas import tpu as pltpu


def attention_kernel(v_ref, q_ref, wv_ref, bv_ref, wq_ref, bq_ref,
                     wl_ref, bl_ref, o_ref):
    Bt, N, Dv = v_ref.shape

    # ---- lin_v: weight-normed Linear + ReLU over all Bt*N object rows -------
    # (Bt, N, Dv) -> (Bt*N, Dv): with N a multiple of 8 this is a layout no-op
    # (sublane collapse), and the MXU sees one dense row tile.
    v2 = v_ref[...].reshape(Bt * N, Dv)                        # bf16
    vm = jnp.dot(v2, wv_ref[...], preferred_element_type=jnp.float32)
    vm = jnp.maximum(vm + bv_ref[...], 0.0)                    # (Bt*N, M) f32

    # ---- lin_q: one batched matmul per tile (not per object / per batch) ----
    qm = jnp.dot(q_ref[...], wq_ref[...], preferred_element_type=jnp.float32)
    qm = jnp.maximum(qm + bq_ref[...], 0.0)                    # (Bt, M) f32

    # ---- q.unsqueeze(1).expand(...) * v  (broadcast over num_obj) -----------
    M = vm.shape[-1]
    x = vm.reshape(Bt, N, M) * qm[:, None, :]                  # (Bt, N, M) f32

    # ---- lin: final projection to glimpses -----------------------------------
    # TODO(synk): at G=2 a VPU broadcast-multiply + lane-reduce would avoid the
    # lane-sparse MXU tile, but the matmul is tiny / correct so keep it simple.
    logits = jnp.dot(x.reshape(Bt * N, M), wl_ref[...],
                     preferred_element_type=jnp.float32) + bl_ref[...]
    logits = logits.reshape(Bt, N, -1)                         # (Bt, N, G)

    # ---- softmax over num_obj (dim=1 of (batch, num_obj, glimpses)) ----------
    m = jnp.max(logits, axis=1, keepdims=True)
    e = jnp.exp(logits - m)
    s = jnp.sum(e, axis=1, keepdims=True)
    o_ref[...] = (e * pl.reciprocal(s, approx=True)).astype(o_ref.dtype)


def _pick_batch_tile(B, N, target_rows=512):
    """Batch elements per grid step.

    Fuse as much batch as keeps the fused row count (Bt*N) around
    `target_rows` (MXU / DMA friendly).  Bt must divide B and — because of the
    (Bt, Dq) q-BlockSpec — be a multiple of 8 unless it covers the whole batch.
    """
    if B * N <= target_rows:
        return B
    best = None
    for bt in range(1, B + 1):
        if B % bt != 0 or bt * N > target_rows:
            continue
        if bt % 8 == 0 or bt == B:
            best = bt
    return best if best is not None else B


def attention_forward(v, q, params, *, target_rows=512):
    """v: (B, N, Dv) f32, q: (B, Dq) f32 -> (B, N, glimpses) f32."""
    B, N, Dv = v.shape
    _, Dq = q.shape
    wv, bv = params["wv"], params["bv"]     # (Dv, M), (1, M)
    wq, bq = params["wq"], params["bq"]     # (Dq, M), (1, M)
    wl, bl = params["wl"], params["bl"]     # (M, G),  (1, G)
    M = wv.shape[1]
    G = wl.shape[1]

    # bf16 MXU inputs, f32 accumulation inside the kernel.
    v_bf = v.astype(jnp.bfloat16)
    q_bf = q.astype(jnp.bfloat16)
    wv_bf = wv.astype(jnp.bfloat16)
    wq_bf = wq.astype(jnp.bfloat16)

    Bt = _pick_batch_tile(B, N, target_rows)
    grid = (B // Bt,)   # "parallel": for B > Bt this also shards across TCs.

    grid_spec = pltpu.PrefetchScalarGridSpec(
        num_scalar_prefetch=0,
        grid=grid,
        in_specs=[
            pl.BlockSpec((Bt, N, Dv), lambda i: (i, 0, 0)),   # v
            pl.BlockSpec((Bt, Dq), lambda i: (i, 0)),         # q
            pl.BlockSpec((Dv, M), lambda i: (0, 0)),          # wv
            pl.BlockSpec((1, M), lambda i: (0, 0)),           # bv
            pl.BlockSpec((Dq, M), lambda i: (0, 0)),          # wq
            pl.BlockSpec((1, M), lambda i: (0, 0)),           # bq
            pl.BlockSpec((M, G), lambda i: (0, 0)),           # wl
            pl.BlockSpec((1, G), lambda i: (0, 0)),           # bl
        ],
        out_specs=pl.BlockSpec((Bt, N, G), lambda i: (i, 0, 0)),
    )

    # Advisory cost estimate (flops / transcendentals / bytes).
    flops = (2 * B * N * Dv * M + 2 * B * Dq * M + 2 * B * N * M * G
             + 6 * B * N * G)
    bytes_accessed = (v_bf.size * 2 + q_bf.size * 2 + wv_bf.size * 2
                      + wq_bf.size * 2
                      + (bv.size + bq.size + wl.size + bl.size) * 4
                      + B * N * G * 4)
    cost = pl.CostEstimate(flops=flops, transcendentals=B * N * G,
                           bytes_accessed=bytes_accessed)

    return pl.pallas_call(
        attention_kernel,
        out_shape=jax.ShapeDtypeStruct((B, N, G), jnp.float32),
        grid_spec=grid_spec,
        cost_estimate=cost,
        compiler_params=pltpu.CompilerParams(
            dimension_semantics=("parallel",)),
    )(v_bf, q_bf, wv_bf, bv, wq_bf, bq, wl, bl)


def _weight_norm_effective(w_raw, g):
    # torch weight_norm with dim=None: W = g * w_raw / ||w_raw||_F
    return g * w_raw / jnp.sqrt(jnp.sum(w_raw * w_raw))


def init_params(key, v_features, q_features, mid_features, glimpses):
    ks = jax.random.split(key, 6)

    def linear(kw, kb, fan_in, fan_out):
        # Deterministic synthetic init (roughly kaiming-uniform scale).
        bound = 1.0 / jnp.sqrt(fan_in)
        w_raw = jax.random.uniform(kw, (fan_out, fan_in), jnp.float32, -bound, bound)
        b = jax.random.uniform(kb, (fan_out,), jnp.float32, -bound, bound)
        g = jnp.sqrt(jnp.sum(w_raw * w_raw))          # weight_norm init: g = ||w||_F
        w_eff = _weight_norm_effective(w_raw, g)      # (out, in)
        return w_eff.T, b.reshape(1, fan_out)         # -> (in, out), (1, out)

    wv, bv = linear(ks[0], ks[1], v_features, mid_features)
    wq, bq = linear(ks[2], ks[3], q_features, mid_features)
    wl, bl = linear(ks[4], ks[5], mid_features, glimpses)
    return {"wv": wv, "bv": bv, "wq": wq, "bq": bq, "wl": wl, "bl": bl}


def reference_forward(v, q, params):
    # Pure-JAX f32 reference matching the PyTorch module semantics.
    vm = jnp.maximum(jnp.einsum("bnd,dm->bnm", v, params["wv"]) + params["bv"][0], 0.0)
    qm = jnp.maximum(q @ params["wq"] + params["bq"][0], 0.0)
    x = vm * qm[:, None, :]
    logits = jnp.einsum("bnm,mg->bng", x, params["wl"]) + params["bl"][0]
    return jax.nn.softmax(logits, axis=1)


if __name__ == "__main__":
    batch, num_obj = 2, 16
    v_features, q_features, mid_features, glimpses = 32, 24, 64, 2

    key = jax.random.PRNGKey(0)
    k_v, k_q, k_p = jax.random.split(key, 3)
    v = jax.random.normal(k_v, (batch, num_obj, v_features), jnp.float32)
    q = jax.random.normal(k_q, (batch, q_features), jnp.float32)
    params = init_params(k_p, v_features, q_features, mid_features, glimpses)

    out = attention_forward(v, q, params)
    out = jax.block_until_ready(out)

    ref = reference_forward(v, q, params)
    assert out.shape == (batch, num_obj, glimpses)
    # bf16 MXU inputs + approx reciprocal -> looser tolerance than pure f32.
    assert jnp.allclose(out, ref, atol=1e-2, rtol=1e-2), "mismatch vs reference"
    # softmax over num_obj sums to 1
    assert jnp.allclose(jnp.sum(out, axis=1), 1.0, atol=5e-3)

    print("KERNEL_OK")
</pallas_src>

<mosaic_0001>
module attributes {stable_mosaic.version = 11 : i64} {
  func.func @attention_kernel(%arg0: i32, %arg1: memref<2x16x32xbf16, #tpu.memory_space<vmem>>, %arg2: memref<2x24xbf16, #tpu.memory_space<vmem>>, %arg3: memref<32x64xbf16, #tpu.memory_space<vmem>>, %arg4: memref<1x64xf32, #tpu.memory_space<vmem>>, %arg5: memref<24x64xbf16, #tpu.memory_space<vmem>>, %arg6: memref<1x64xf32, #tpu.memory_space<vmem>>, %arg7: memref<64x2xf32, #tpu.memory_space<vmem>>, %arg8: memref<1x2xf32, #tpu.memory_space<vmem>>, %arg9: memref<2x16x2xf32, #tpu.memory_space<vmem>>) attributes {dimension_semantics = [#tpu.dimension_semantics<parallel>], iteration_bounds = array<i64: 1>, scalar_prefetch = 0 : i64, scratch_operands = 0 : i64, tpu.core_type = #tpu.core_type<tc>, window_params = [{transform_indices = @transform_0, window_bounds = array<i64: 2, 16, 32>}, {transform_indices = @transform_1, window_bounds = array<i64: 2, 24>}, {pipeline_mode = #tpu.pipeline_mode<synchronous>, transform_indices = @transform_2, window_bounds = array<i64: 32, 64>}, {pipeline_mode = #tpu.pipeline_mode<synchronous>, transform_indices = @transform_3, window_bounds = array<i64: 1, 64>}, {pipeline_mode = #tpu.pipeline_mode<synchronous>, transform_indices = @transform_4, window_bounds = array<i64: 24, 64>}, {pipeline_mode = #tpu.pipeline_mode<synchronous>, transform_indices = @transform_5, window_bounds = array<i64: 1, 64>}, {pipeline_mode = #tpu.pipeline_mode<synchronous>, transform_indices = @transform_6, window_bounds = array<i64: 64, 2>}, {pipeline_mode = #tpu.pipeline_mode<synchronous>, transform_indices = @transform_7, window_bounds = array<i64: 1, 2>}, {transform_indices = @transform_8, window_bounds = array<i64: 2, 16, 2>}]} {
    %c0 = arith.constant 0 : index
    %c0_0 = arith.constant 0 : index
    %c0_1 = arith.constant 0 : index
    %0 = vector.load %arg1[%c0, %c0_0, %c0_1] : memref<2x16x32xbf16, #tpu.memory_space<vmem>>, vector<2x16x32xbf16>
    %1 = vector.shape_cast %0 : vector<2x16x32xbf16> to vector<32x32xbf16>
    %c0_2 = arith.constant 0 : index
    %c0_3 = arith.constant 0 : index
    %2 = vector.load %arg3[%c0_2, %c0_3] : memref<32x64xbf16, #tpu.memory_space<vmem>>, vector<32x64xbf16>
    %cst = arith.constant dense<0.000000e+00> : vector<32x64xf32>
    %3 = tpu.matmul %1, %2, %cst {dimension_numbers = #tpu.dot_dimension_numbers<[1], [0], [0], [1], [0, 0, 1, 1], [], []>} : vector<32x32xbf16>, vector<32x64xbf16>, vector<32x64xf32> -> vector<32x64xf32>
    %c0_4 = arith.constant 0 : index
    %c0_5 = arith.constant 0 : index
    %4 = vector.load %arg4[%c0_4, %c0_5] : memref<1x64xf32, #tpu.memory_space<vmem>>, vector<1x64xf32>
    %5 = vector.broadcast %4 : vector<1x64xf32> to vector<32x64xf32>
    %6 = arith.addf %3, %5 : vector<32x64xf32>
    %cst_6 = arith.constant 0.000000e+00 : f32
    %7 = vector.broadcast %cst_6 : f32 to vector<32x64xf32>
    %8 = arith.maximumf %6, %7 : vector<32x64xf32>
    %c0_7 = arith.constant 0 : index
    %c0_8 = arith.constant 0 : index
    %9 = vector.load %arg2[%c0_7, %c0_8] : memref<2x24xbf16, #tpu.memory_space<vmem>>, vector<2x24xbf16>
    %c0_9 = arith.constant 0 : index
    %c0_10 = arith.constant 0 : index
    %10 = vector.load %arg5[%c0_9, %c0_10] : memref<24x64xbf16, #tpu.memory_space<vmem>>, vector<24x64xbf16>
    %cst_11 = arith.constant dense<0.000000e+00> : vector<2x64xf32>
    %11 = tpu.matmul %9, %10, %cst_11 {dimension_numbers = #tpu.dot_dimension_numbers<[1], [0], [0], [1], [0, 0, 1, 1], [], []>} : vector<2x24xbf16>, vector<24x64xbf16>, vector<2x64xf32> -> vector<2x64xf32>
    %c0_12 = arith.constant 0 : index
    %c0_13 = arith.constant 0 : index
    %12 = vector.load %arg6[%c0_12, %c0_13] : memref<1x64xf32, #tpu.memory_space<vmem>>, vector<1x64xf32>
    %13 = vector.broadcast %12 : vector<1x64xf32> to vector<2x64xf32>
    %14 = arith.addf %11, %13 : vector<2x64xf32>
    %cst_14 = arith.constant 0.000000e+00 : f32
    %15 = vector.broadcast %cst_14 : f32 to vector<2x64xf32>
    %16 = arith.maximumf %14, %15 : vector<2x64xf32>
    %17 = vector.shape_cast %8 : vector<32x64xf32> to vector<2x16x64xf32>
    %18 = vector.shape_cast %16 : vector<2x64xf32> to vector<2x1x64xf32>
    %19 = vector.broadcast %18 : vector<2x1x64xf32> to vector<2x16x64xf32>
    %20 = arith.mulf %17, %19 : vector<2x16x64xf32>
    %21 = vector.shape_cast %20 : vector<2x16x64xf32> to vector<32x64xf32>
    %c0_15 = arith.constant 0 : index
    %c0_16 = arith.constant 0 : index
    %22 = vector.load %arg7[%c0_15, %c0_16] : memref<64x2xf32, #tpu.memory_space<vmem>>, vector<64x2xf32>
    %cst_17 = arith.constant dense<0.000000e+00> : vector<32x2xf32>
    %23 = tpu.matmul %21, %22, %cst_17 {dimension_numbers = #tpu.dot_dimension_numbers<[1], [0], [0], [1], [0, 0, 1, 1], [], []>} : vector<32x64xf32>, vector<64x2xf32>, vector<32x2xf32> -> vector<32x2xf32>
    %c0_18 = arith.constant 0 : index
    %c0_19 = arith.constant 0 : index
    %24 = vector.load %arg8[%c0_18, %c0_19] : memref<1x2xf32, #tpu.memory_space<vmem>>, vector<1x2xf32>
    %25 = vector.broadcast %24 : vector<1x2xf32> to vector<32x2xf32>
    %26 = arith.addf %23, %25 : vector<32x2xf32>
    %27 = vector.shape_cast %26 : vector<32x2xf32> to vector<2x16x2xf32>
    %cst_20 = arith.constant dense<0xFF800000> : vector<2x2xf32>
    %28 = vector.multi_reduction <maximumf>, %27, %cst_20 [1] : vector<2x16x2xf32> to vector<2x2xf32>
    %29 = vector.shape_cast %28 : vector<2x2xf32> to vector<2x1x2xf32>
    %30 = vector.broadcast %29 : vector<2x1x2xf32> to vector<2x16x2xf32>
    %31 = arith.subf %27, %30 : vector<2x16x2xf32>
    %32 = math.exp %31 : vector<2x16x2xf32>
    %cst_21 = arith.constant dense<0.000000e+00> : vector<2x2xf32>
    %33 = vector.multi_reduction <add>, %32, %cst_21 [1] : vector<2x16x2xf32> to vector<2x2xf32>
    %34 = vector.shape_cast %33 : vector<2x2xf32> to vector<2x1x2xf32>
    %35 = tpu.reciprocal %34 {approx = true} : vector<2x1x2xf32> -> vector<2x1x2xf32>
    %36 = vector.broadcast %35 : vector<2x1x2xf32> to vector<2x16x2xf32>
    %37 = arith.mulf %32, %36 : vector<2x16x2xf32>
    %c0_22 = arith.constant 0 : index
    %c0_23 = arith.constant 0 : index
    %c0_24 = arith.constant 0 : index
    %38 = vector.load %arg9[%c0_22, %c0_23, %c0_24] : memref<2x16x2xf32, #tpu.memory_space<vmem>>, vector<2x16x2xf32>
    tpu.vector_store %arg9[%c0_22, %c0_23, %c0_24], %37 {strides = array<i32>} : memref<2x16x2xf32, #tpu.memory_space<vmem>>, vector<2x16x2xf32>,
    return
  }
  func.func @transform_0(%arg0: i32) -> (i32, i32, i32) {
    %c0_i32 = arith.constant 0 : i32
    %c0_i32_0 = arith.constant 0 : i32
    %c0_i32_1 = arith.constant 0 : i32
    return %arg0, %c0_i32, %c0_i32_0 : i32, i32, i32
  }
  func.func @transform_1(%arg0: i32) -> (i32, i32) {
    %c0_i32 = arith.constant 0 : i32
    %c0_i32_0 = arith.constant 0 : i32
    return %arg0, %c0_i32 : i32, i32
  }
  func.func @transform_2(%arg0: i32) -> (i32, i32) {
    %c0_i32 = arith.constant 0 : i32
    %c0_i32_0 = arith.constant 0 : i32
    %c0_i32_1 = arith.constant 0 : i32
    return %c0_i32, %c0_i32_0 : i32, i32
  }
  func.func @transform_3(%arg0: i32) -> (i32, i32) {
    %c0_i32 = arith.constant 0 : i32
    %c0_i32_0 = arith.constant 0 : i32
    %c0_i32_1 = arith.constant 0 : i32
    return %c0_i32, %c0_i32_0 : i32, i32
  }
  func.func @transform_4(%arg0: i32) -> (i32, i32) {
    %c0_i32 = arith.constant 0 : i32
    %c0_i32_0 = arith.constant 0 : i32
    %c0_i32_1 = arith.constant 0 : i32
    return %c0_i32, %c0_i32_0 : i32, i32
  }
  func.func @transform_5(%arg0: i32) -> (i32, i32) {
    %c0_i32 = arith.constant 0 : i32
    %c0_i32_0 = arith.constant 0 : i32
    %c0_i32_1 = arith.constant 0 : i32
    return %c0_i32, %c0_i32_0 : i32, i32
  }
  func.func @transform_6(%arg0: i32) -> (i32, i32) {
    %c0_i32 = arith.constant 0 : i32
    %c0_i32_0 = arith.constant 0 : i32
    %c0_i32_1 = arith.constant 0 : i32
    return %c0_i32, %c0_i32_0 : i32, i32
  }
  func.func @transform_7(%arg0: i32) -> (i32, i32) {
    %c0_i32 = arith.constant 0 : i32
    %c0_i32_0 = arith.constant 0 : i32
    %c0_i32_1 = arith.constant 0 : i32
    return %c0_i32, %c0_i32_0 : i32, i32
  }
  func.func @transform_8(%arg0: i32) -> (i32, i32, i32) {
    %c0_i32 = arith.constant 0 : i32
    %c0_i32_0 = arith.constant 0 : i32
    %c0_i32_1 = arith.constant 0 : i32
    return %arg0, %c0_i32, %c0_i32_0 : i32, i32, i32
  }
}

</mosaic_0001>

<llo_original>
// kernel: tpu_custom_call.1
$region0: #{tpu_custom_call.1}
  #allocation0 [shape = 'u32[]', space=smem, size = 0x4, offset = 0x4, fixed_abs, tag = 'smem constant byte address 0x4 - core index']
  #allocation1 [shape = 'u32[144,128]{1,0:T(1,128)}', space=vmem, size = 0x12000, scoped, tag = 'internal scratch']
  %s0 = inlined_call_operand.vmem [shape: bf16[2,16,32], index: 0, kind: input, shape index: {}]
  %s1 = inlined_call_operand.vmem [shape: bf16[2,24], index: 1, kind: input, shape index: {}]
  %s2 = inlined_call_operand.vmem [shape: bf16[32,64], index: 2, kind: input, shape index: {}]
  %s3 = inlined_call_operand.vmem [shape: f32[1,64], index: 3, kind: input, shape index: {}]
  %s4 = inlined_call_operand.vmem [shape: bf16[24,64], index: 4, kind: input, shape index: {}]
  %s5 = inlined_call_operand.vmem [shape: f32[1,64], index: 5, kind: input, shape index: {}]
  %s6 = inlined_call_operand.vmem [shape: f32[64,2], index: 6, kind: input, shape index: {}]
  %s7 = inlined_call_operand.vmem [shape: f32[1,2], index: 7, kind: input, shape index: {}]
  %s8 = inlined_call_operand.vmem [shape: f32[2,16,2], index: 8, kind: output, shape index: {}]
  %s9 = sld [smem:[#allocation0]]
  $region42: #{tpu_custom_call.1} parent=0
    _
  %s11 = ssub.s32 1, %s9
  %s12 = scalar_select 0, %s11, %s9
  // Predicated region
  $region2: #{tpu_custom_call.1} parent=0 // pred_check
    _
  $region3: #{tpu_custom_call.1} parent=0 // pred_check_branch
    %14 = sbr.rel (0) target = $region5
  $region4: #{tpu_custom_call.1} parent=0 // pred_region
    _
  $region5: #{tpu_custom_call.1} parent=0 // pred_fallthru
    _
  // Predicated region
  $region6: #{tpu_custom_call.1} parent=0 // pred_check
    _
  $region7: #{tpu_custom_call.1} parent=0 // pred_check_branch
    %16 = sbr.rel (0) target = $region9
  $region8: #{tpu_custom_call.1} parent=0 // pred_region
    _
  $region9: #{tpu_custom_call.1} parent=0 // pred_fallthru
    _
  // Predicated region
  $region10: #{tpu_custom_call.1} parent=0 // pred_check
    _
  $region11: #{tpu_custom_call.1} parent=0 // pred_check_branch
    %18 = sbr.rel (0) target = $region13
  $region12: #{tpu_custom_call.1} parent=0 // pred_region
    _
  $region13: #{tpu_custom_call.1} parent=0 // pred_fallthru
    _
  // Predicated region
  $region14: #{tpu_custom_call.1} parent=0 // pred_check
    _
  $region15: #{tpu_custom_call.1} parent=0 // pred_check_branch
    %20 = sbr.rel (0) target = $region17
  $region16: #{tpu_custom_call.1} parent=0 // pred_region
    _
  $region17: #{tpu_custom_call.1} parent=0 // pred_fallthru
    _
  // Predicated region
  $region18: #{tpu_custom_call.1} parent=0 // pred_check
    _
  $region19: #{tpu_custom_call.1} parent=0 // pred_check_branch
    %22 = sbr.rel (0) target = $region21
  $region20: #{tpu_custom_call.1} parent=0 // pred_region
    _
  $region21: #{tpu_custom_call.1} parent=0 // pred_fallthru
    _
  // Predicated region
  $region22: #{tpu_custom_call.1} parent=0 // pred_check
    _
  $region23: #{tpu_custom_call.1} parent=0 // pred_check_branch
    %24 = sbr.rel (0) target = $region25
  $region24: #{tpu_custom_call.1} parent=0 // pred_region
    _
  $region25: #{tpu_custom_call.1} parent=0 // pred_fallthru
    _
  // Predicated region
  $region26: #{tpu_custom_call.1} parent=0 // pred_check
    _
  $region27: #{tpu_custom_call.1} parent=0 // pred_check_branch
    %26 = sbr.rel (0) target = $region29
  $region28: #{tpu_custom_call.1} parent=0 // pred_region
    _
  $region29: #{tpu_custom_call.1} parent=0 // pred_fallthru
    _
  // Predicated region
  $region30: #{tpu_custom_call.1} parent=0 // pred_check
    _
  $region31: #{tpu_custom_call.1} parent=0 // pred_check_branch
    %28 = sbr.rel (0) target = $region33
  $region32: #{tpu_custom_call.1} parent=0 // pred_region
    _
  $region33: #{tpu_custom_call.1} parent=0 // pred_fallthru
    _
  %v30 = vld [vmem:[%s0] sm:$0xf]
  %v31 = vld [vmem:[%s0 + $0x4] sm:$0xf]
  %v32 = vld [vmem:[%s0 + $0x8] sm:$0xf]
  %v33 = vld [vmem:[%s0 + $0xc] sm:$0xf]
  %v34 = vld [vmem:[%s2] sm:$0xf]
  %v35 = vld [vmem:[%s2 + $0x4] sm:$0xf]
  %v36 = vld [vmem:[%s2 + $0x8] sm:$0xf]
  %v37 = vld [vmem:[%s2 + $0xc] sm:$0xf]
  %v38 = vld [vmem:[%s3] sm:$0x1]
  %v40 = vlaneseq
  %v41 = vshrl.u32 %v40, 7
  %v42 = vsub.s32 0, %v41
  %v43 = vrot.slane %v38, %v42
  %v49 = vunpack.c.l.b16 %v30
  %v50 = vunpack.c.l.b16 %v31
  %v51 = vunpack.c.l.b16 %v32
  %v52 = vunpack.c.l.b16 %v33
  %v53 = vpack.c.b16 %v50, %v49
  %v54 = vpack.c.b16 %v52, %v51
  %v59 = vunpack.c.l.b16 %v34
  %v60 = vunpack.c.l.b16 %v35
  %v61 = vunpack.c.l.b16 %v36
  %v62 = vunpack.c.l.b16 %v37
  %v63 = vpack.c.b16 %v60, %v59
  %v64 = vpack.c.b16 %v62, %v61
  %vm67 = vcmask 261120
  %v69 = vsel %vm67, %v53, 0
  %v72 = vsel %vm67, %v54, 0
  %74 = vmatprep.subr.bf16.mxu0 0
  %75 = vmatpush1.bf16.msra.mxu0 %v63
  %76 = vmatprep.subr.bf16.mxu0 0
  %77 = vmatpush1.bf16.msra.mxu0 %v64
  %78 = vmatprep.subr.bf16.mxu0 0
  %79 = vmatpush1.bf16.msra.mxu0 0
  %80 = vmatprep.subr.bf16.mxu0 0
  %81 = vmatpush1.bf16.msra.mxu0 0
  %82 = vmatprep.subr.bf16.mxu0 0
  %83 = vmatpush1.bf16.msra.mxu0 0
  %84 = vmatprep.subr.bf16.mxu0 0
  %85 = vmatpush1.bf16.msra.mxu0 0
  %86 = vmatprep.subr.bf16.mxu0 0
  %87 = vmatpush1.bf16.msra.mxu0 0
  %88 = vmatprep.subr.bf16.mxu0 0
  %89 = vmatpush1.bf16.msra.mxu0 0
  %90 = vmatprep.subr.bf16.mxu0 0
  %91 = vmatpush1.bf16.msra.mxu0 0
  %92 = vmatprep.subr.bf16.mxu0 0
  %93 = vmatpush1.bf16.msra.mxu0 0
  %94 = vmatprep.subr.bf16.mxu0 0
  %95 = vmatpush1.bf16.msra.mxu0 0
  %96 = vmatprep.subr.bf16.mxu0 0
  %97 = vmatpush1.bf16.msra.mxu0 0
  %98 = vmatprep.subr.bf16.mxu0 0
  %99 = vmatpush1.bf16.msra.mxu0 0
  %100 = vmatprep.subr.bf16.mxu0 0
  %101 = vmatpush1.bf16.msra.mxu0 0
  %102 = vmatprep.subr.bf16.mxu0 0
  %103 = vmatpush1.bf16.msra.mxu0 0
  %104 = vmatprep.subr.bf16.mxu0 0
  %105 = vmatpush1.bf16.msra.mxu0 0
  %106 = vmatprep.mubr.bf16.mxu0 0
  %107 = vmatmul.mubr.bf16.gmra.mrb[0].mxu0 %v69
  %v108 = vpop.f32.mrb[0].mxu0
  %v109 = vadd.f32 %v43, %v108
  %v110 = vpop.f32.mrb[0].mxu0
  %v111 = vpop.f32.mrb[0].mxu0
  %v112 = vadd.f32 %v43, %v111
  %v113 = vpop.f32.mrb[0].mxu0
  %114 = vmatprep.mubr.bf16.mxu0 0
  %115 = vmatmul.mubr.bf16.gmra.mrb[0].mxu0 %v72
  %v116 = vpop.f32.mrb[0].mxu0
  %v117 = vadd.f32 %v43, %v116
  %v118 = vpop.f32.mrb[0].mxu0
  %v119 = vpop.f32.mrb[0].mxu0
  %v120 = vadd.f32 %v43, %v119
  %v121 = vpop.f32.mrb[0].mxu0
  %122 = vdwg.mxu0
  %v123 = vmax.f32 %v109, 0.0
  %v124 = vmax.f32 %v112, 0.0
  %v125 = vmax.f32 %v117, 0.0
  %v126 = vmax.f32 %v120, 0.0
  %v127 = vld [vmem:[%s1] sm:$0x1]
  %v128 = vld [vmem:[%s4] sm:$0xf]
  %v129 = vld [vmem:[%s4 + $0x4] sm:$0xf]
  %v130 = vld [vmem:[%s4 + $0x8] sm:$0xf]
  %v131 = vld [vmem:[%s5] sm:$0x1]
  %v133 = vlaneseq
  %v134 = vshrl.u32 %v133, 7
  %v135 = vsub.s32 0, %v134
  %v136 = vrot.slane %v131, %v135
  %v141 = vunpack.c.l.b16 %v128
  %v142 = vunpack.c.l.b16 %v129
  %v143 = vunpack.c.l.b16 %v130
  %v144 = vpack.c.b16 %v142, %v141
  %v145 = vpack.c.b16 %v143, %v143
  %vm147 = vcmask 195584
  %v149 = vsel %vm147, %v127, 0
  %vm151 = vcmask 1043456
  %v153 = vsel %vm151, %v145, 0
  %155 = vmatprep.subr.bf16.mxu0 0
  %156 = vmatpush1.bf16.msra.mxu0 %v144
  %157 = vmatprep.subr.bf16.mxu0 0
  %158 = vmatpush1.bf16.msra.mxu0 %v153
  %159 = vmatprep.subr.bf16.mxu0 0
  %160 = vmatpush1.bf16.msra.mxu0 0
  %161 = vmatprep.subr.bf16.mxu0 0
  %162 = vmatpush1.bf16.msra.mxu0 0
  %163 = vmatprep.subr.bf16.mxu0 0
  %164 = vmatpush1.bf16.msra.mxu0 0
  %165 = vmatprep.subr.bf16.mxu0 0
  %166 = vmatpush1.bf16.msra.mxu0 0
  %167 = vmatprep.subr.bf16.mxu0 0
  %168 = vmatpush1.bf16.msra.mxu0 0
  %169 = vmatprep.subr.bf16.mxu0 0
  %170 = vmatpush1.bf16.msra.mxu0 0
  %171 = vmatprep.subr.bf16.mxu0 0
  %172 = vmatpush1.bf16.msra.mxu0 0
  %173 = vmatprep.subr.bf16.mxu0 0
  %174 = vmatpush1.bf16.msra.mxu0 0
  %175 = vmatprep.subr.bf16.mxu0 0
  %176 = vmatpush1.bf16.msra.mxu0 0
  %177 = vmatprep.subr.bf16.mxu0 0
  %178 = vmatpush1.bf16.msra.mxu0 0
  %179 = vmatprep.subr.bf16.mxu0 0
  %180 = vmatpush1.bf16.msra.mxu0 0
  %181 = vmatprep.subr.bf16.mxu0 0
  %182 = vmatpush1.bf16.msra.mxu0 0
  %183 = vmatprep.subr.bf16.mxu0 0
  %184 = vmatpush1.bf16.msra.mxu0 0
  %185 = vmatprep.subr.bf16.mxu0 0
  %186 = vmatpush1.bf16.msra.mxu0 0
  %187 = vmatprep.mubr.bf16.mxu0 0
  %188 = vmatmul.mubr.bf16.gmra.mrb[0].mxu0 %v149
  %v189 = vpop.f32.mrb[0].mxu0
  %v190 = vadd.f32 %v136, %v189
  %v191 = vpop.f32.mrb[0].mxu0
  %v192 = vpop.f32.mrb[0].mxu0
  %v193 = vpop.f32.mrb[0].mxu0
  %194 = vdwg.mxu0
  %v195 = vmax.f32 %v190, 0.0
  %v198 = vunpack.c.l.s4 1966171168
  %v199 = vunpack.c.0.s8 %v198
  %v200 = vlaneseq
  %v201 = vshrl.u32 %v200, 7
  %v202 = vsub.s32 %v199, %v201
  %v203 = vrot.slane %v195, %v202
  %v204 = vcombine.high %v203, %v203
  %v206 = vunpack.c.l.s4 1966171168
  %v207 = vunpack.c.0.s8 %v206
  %v208 = vlaneseq
  %v209 = vshrl.u32 %v208, 7
  %v210 = vsub.s32 %v207, %v209
  %v211 = vrot.slane %v203, %v210
  %v213 = vunpack.c.l.s4 1966171168
  %v214 = vunpack.c.0.s8 %v213
  %v215 = vlaneseq
  %v216 = vshrl.u32 %v215, 7
  %v217 = vsub.s32 %v214, %v216
  %v218 = vrot.slane %v204, %v217
  %v219 = vlaneseq
  %v220 = vshrl.u32 %v219, 7
  %v221 = vsub.s32 0, %v220
  %v222 = vrot.slane %v211, %v221
  %v223 = vlaneseq
  %v224 = vshrl.u32 %v223, 7
  %v225 = vsub.s32 0, %v224
  %v226 = vrot.slane %v218, %v225
  %v229 = vmul.f32 %v123, %v222
  %v230 = vmul.f32 %v124, %v222
  %v231 = vmul.f32 %v125, %v226
  %v232 = vmul.f32 %v126, %v226
  %v233 = vld [vmem:[%s6] sm:$0xff]
  %v234 = vld [vmem:[%s6 + $0x8] sm:$0xff]
  %v235 = vld [vmem:[%s6 + $0x10] sm:$0xff]
  %v236 = vld [vmem:[%s6 + $0x18] sm:$0xff]
  %v237 = vld [vmem:[%s6 + $0x20] sm:$0xff]
  %v238 = vld [vmem:[%s6 + $0x28] sm:$0xff]
  %v239 = vld [vmem:[%s6 + $0x30] sm:$0xff]
  %v240 = vld [vmem:[%s6 + $0x38] sm:$0xff]
  %v241 = vld [vmem:[%s7] sm:$0x1]
  %v243 = vlaneseq
  %v244 = vshrl.u32 %v243, 7
  %v245 = vsub.s32 0, %v244
  %v246 = vrot.slane %v241, %v245
  %vm248 = vcmask 523264
  %v250 = vsel %vm248, %v229, 0
  %v253 = vsel %vm248, %v230, 0
  %v256 = vsel %vm248, %v231, 0
  %v259 = vsel %vm248, %v232, 0
  %261 = vmatprep.subr.mxu0 0.0
  %262 = vmatpush1.msra.mxu0 %v233
  %263 = vmatprep.subr.mxu0 0.0
  %264 = vmatpush1.msra.mxu0 %v234
  %265 = vmatprep.subr.mxu0 0.0
  %266 = vmatpush1.msra.mxu0 %v235
  %267 = vmatprep.subr.mxu0 0.0
  %268 = vmatpush1.msra.mxu0 %v236
  %269 = vmatprep.subr.mxu0 0.0
  %270 = vmatpush1.msra.mxu0 %v237
  %271 = vmatprep.subr.mxu0 0.0
  %272 = vmatpush1.msra.mxu0 %v238
  %273 = vmatprep.subr.mxu0 0.0
  %274 = vmatpush1.msra.mxu0 %v239
  %275 = vmatprep.subr.mxu0 0.0
  %276 = vmatpush1.msra.mxu0 %v240
  %277 = vmatprep.subr.mxu0 0.0
  %278 = vmatpush1.msra.mxu0 0.0
  %279 = vmatprep.subr.mxu0 0.0
  %280 = vmatpush1.msra.mxu0 0.0
  %281 = vmatprep.subr.mxu0 0.0
  %282 = vmatpush1.msra.mxu0 0.0
  %283 = vmatprep.subr.mxu0 0.0
  %284 = vmatpush1.msra.mxu0 0.0
  %285 = vmatprep.subr.mxu0 0.0
  %286 = vmatpush1.msra.mxu0 0.0
  %287 = vmatprep.subr.mxu0 0.0
  %288 = vmatpush1.msra.mxu0 0.0
  %289 = vmatprep.subr.mxu0 0.0
  %290 = vmatpush1.msra.mxu0 0.0
  %291 = vmatprep.subr.mxu0 0.0
  %292 = vmatpush1.msra.mxu0 0.0
  %293 = vmatprep.subr.mxu0 0.0
  %294 = vmatpush1.msra.mxu0 0.0
  %295 = vmatprep.subr.mxu0 0.0
  %296 = vmatpush1.msra.mxu0 0.0
  %297 = vmatprep.subr.mxu0 0.0
  %298 = vmatpush1.msra.mxu0 0.0
  %299 = vmatprep.subr.mxu0 0.0
  %300 = vmatpush1.msra.mxu0 0.0
  %301 = vmatprep.subr.mxu0 0.0
  %302 = vmatpush1.msra.mxu0 0.0
  %303 = vmatprep.subr.mxu0 0.0
  %304 = vmatpush1.msra.mxu0 0.0
  %305 = vmatprep.subr.mxu0 0.0
  %306 = vmatpush1.msra.mxu0 0.0
  %307 = vmatprep.subr.mxu0 0.0
  %308 = vmatpush1.msra.mxu0 0.0
  %309 = vmatprep.subr.mxu0 0.0
  %310 = vmatpush1.msra.mxu0 0.0
  %311 = vmatprep.subr.mxu0 0.0
  %312 = vmatpush1.msra.mxu0 0.0
  %313 = vmatprep.subr.mxu0 0.0
  %314 = vmatpush1.msra.mxu0 0.0
  %315 = vmatprep.subr.mxu0 0.0
  %316 = vmatpush1.msra.mxu0 0.0
  %317 = vmatprep.subr.mxu0 0.0
  %318 = vmatpush1.msra.mxu0 0.0
  %319 = vmatprep.subr.mxu0 0.0
  %320 = vmatpush1.msra.mxu0 0.0
  %321 = vmatprep.subr.mxu0 0.0
  %322 = vmatpush1.msra.mxu0 0.0
  %323 = vmatprep.subr.mxu0 0.0
  %324 = vmatpush1.msra.mxu0 0.0
  %325 = vmatprep.mubr.f32.mxu0 0.0
  %326 = vmatmul.mubr.f32.gmra.mrb[0].mxu0 %v250
  %v327 = vpop.f32.mrb[0].mxu0
  %v328 = vadd.f32 %v246, %v327
  %v329 = vpop.f32.mrb[0].mxu0
  %330 = vmatprep.mubr.f32.mxu0 0.0
  %331 = vmatmul.mubr.f32.gmra.mrb[0].mxu0 %v253
  %v332 = vpop.f32.mrb[0].mxu0
  %v333 = vadd.f32 %v246, %v332
  %v334 = vpop.f32.mrb[0].mxu0
  %335 = vmatprep.mubr.f32.mxu0 0.0
  %336 = vmatmul.mubr.f32.gmra.mrb[0].mxu0 %v256
  %v337 = vpop.f32.mrb[0].mxu0
  %v338 = vadd.f32 %v246, %v337
  %v339 = vpop.f32.mrb[0].mxu0
  %340 = vmatprep.mubr.f32.mxu0 0.0
  %341 = vmatmul.mubr.f32.gmra.mrb[0].mxu0 %v259
  %v342 = vpop.f32.mrb[0].mxu0
  %v343 = vadd.f32 %v246, %v342
  %v344 = vpop.f32.mrb[0].mxu0
  %345 = vdwg.mxu0
  %vm346 = vcmask 15360
  %v347 = vsel %vm346, %v328, -inf
  %v348 = vsel %vm346, %v333, -inf
  %v349 = vmax.f32 %v347, %v348
  %v350 = vrot.slane %v349, 4
  %v351 = vmax.f32 %v349, %v350
  %v352 = vrot.slane %v351, 2
  %v353 = vmax.f32 %v351, %v352
  %v354 = vrot.slane %v353, 1
  %v355 = vmax.f32 %v353, %v354
  %v356 = vsel %vm346, %v338, -inf
  %v357 = vsel %vm346, %v343, -inf
  %v358 = vmax.f32 %v356, %v357
  %v359 = vrot.slane %v358, 4
  %v360 = vmax.f32 %v358, %v359
  %v361 = vrot.slane %v360, 2
  %v362 = vmax.f32 %v360, %v361
  %v363 = vrot.slane %v362, 1
  %v364 = vmax.f32 %v362, %v363
  %v365 = vsub.f32 %v328, %v355
  %v366 = vsub.f32 %v333, %v355
  %v367 = vsub.f32 %v338, %v364
  %v368 = vsub.f32 %v343, %v364
  %v369 = vmul.f32 %v365, 1.442695
  %v370 = vpow.pop %v369
  %v371 = vmul.f32 %v366, 1.442695
  %v372 = vpow.pop %v371
  %v373 = vmul.f32 %v367, 1.442695
  %v374 = vpow.pop %v373
  %v375 = vmul.f32 %v368, 1.442695
  %v376 = vpow.pop %v375
  %v377 = vsel %vm346, %v370, 0.0
  %v378 = vsel %vm346, %v372, 0.0
  %v379 = vadd.f32 %v377, %v378
  %v380 = vrot.slane %v379, 4
  %v381 = vadd.f32 %v379, %v380
  %v382 = vrot.slane %v381, 2
  %v383 = vadd.f32 %v381, %v382
  %v384 = vrot.slane %v383, 1
  %v385 = vadd.f32 %v383, %v384
  %v386 = vsel %vm346, %v374, 0.0
  %v387 = vsel %vm346, %v376, 0.0
  %v388 = vadd.f32 %v386, %v387
  %v389 = vrot.slane %v388, 4
  %v390 = vadd.f32 %v388, %v389
  %v391 = vrot.slane %v390, 2
  %v392 = vadd.f32 %v390, %v391
  %v393 = vrot.slane %v392, 1
  %v394 = vadd.f32 %v392, %v393
  %v395 = vrcp.pop %v385
  %v396 = vrcp.pop %v394
  %v397 = vmul.f32 %v370, %v395
  %v398 = vmul.f32 %v372, %v395
  %v399 = vmul.f32 %v374, %v396
  %v400 = vmul.f32 %v376, %v396
  %401 = vst.msk [vmem:[%s8] sm:$0xff] %vm346, %v397
  %402 = vst.msk [vmem:[%s8 + $0x8] sm:$0xff] %vm346, %v398
  %403 = vst.msk [vmem:[%s8 + $0x10] sm:$0xff] %vm346, %v399
  %404 = vst.msk [vmem:[%s8 + $0x18] sm:$0xff] %vm346, %v400
  // Predicated region
  $region34: #{tpu_custom_call.1} parent=0 // pred_check
    _
  $region35: #{tpu_custom_call.1} parent=0 // pred_check_branch
    %406 = sbr.rel (0) target = $region37
  $region36: #{tpu_custom_call.1} parent=0 // pred_region
    _
  $region37: #{tpu_custom_call.1} parent=0 // pred_fallthru
    _
  // Predicated region
  $region38: #{tpu_custom_call.1} parent=0 // pred_check
    _
  $region39: #{tpu_custom_call.1} parent=0 // pred_check_branch
    %408 = sbr.rel (0) target = $region41
  $region40: #{tpu_custom_call.1} parent=0 // pred_region
    _
  $region41: #{tpu_custom_call.1} parent=0 // pred_fallthru
    _

</llo_original>
